<compile_context>
chip_gen: v7x
topology: tpu7x:2x2x1
jax: 0.10.0
libtpu: 0.0.40
codegen_flags: <defaults>
</compile_context>

<pallas_src>
import jax
import jax.numpy as jnp
from jax import lax
from jax.experimental import pallas as pl
from jax.experimental.pallas import tpu as pltpu


def _lstm_last_kernel(x_ref, wih_ref, whh_ref, b_ref, out_ref):
    """Single-invocation LSTM over the whole sequence (resident in VMEM).

    x_ref   : (B, T, D)  full input sequence, batch-first (no wrapper transpose)
    wih_ref : (D, 4H)    input->gates weight, pre-transposed
    whh_ref : (H, 4H)    hidden->gates weight, pre-transposed
    b_ref   : (1, 4H)    b_ih + b_hh (f32)
    out_ref : (B, H)     h_T of the single LSTM layer
    """
    B, T, D = x_ref.shape
    H = whh_ref.shape[0]

    # [R1] Hoisted input projection: one MXU GEMM with M = B*T (better fill than
    # M = B), bias fused once. (B,T,D)->(B*T,D) only regroups sublane tiles.
    x2d = x_ref[...].reshape(B * T, D)
    gx = (
        jnp.dot(x2d, wih_ref[...], preferred_element_type=jnp.float32)
        + b_ref[...]
    ).reshape(B, T, 4 * H)                          # (B, T, 4H), f32

    whh = whh_ref[...]                              # (H, 4H), loaded once

    h = jnp.zeros((B, H), jnp.float32)
    c = jnp.zeros((B, H), jnp.float32)

    # [R2] Fully-unrolled serial recurrence (T small & static): only the tiny
    # h @ W_hh^T GEMM and the gate math remain on the latency-bound chain.
    for t in range(T):                              # static indices -> static slices
        gates = gx[:, t, :] + jnp.dot(
            h.astype(whh.dtype), whh, preferred_element_type=jnp.float32
        )                                           # (B, 4H), f32

        # [R3] Activations on the full 128-lane gate vreg: 2 EUP pushes here
        # (+ 1 for tanh(c) below) instead of 4 partial-lane ones.
        sig = jax.nn.sigmoid(gates)                 # i | f | . | o  (PyTorch order)
        th = jnp.tanh(gates)                        # . | . | g | .

        i_g = sig[:, 0 * H:1 * H]
        f_g = sig[:, 1 * H:2 * H]
        g_g = th[:, 2 * H:3 * H]
        o_g = sig[:, 3 * H:4 * H]

        c = f_g * c + i_g * g_g
        h = o_g * jnp.tanh(c)

    out_ref[...] = h.astype(out_ref.dtype)


def question_embedding_forward(x, w_ih, w_hh, b_ih, b_hh, *, matmul_dtype=None):
    """x: (B, T, D). Returns (B, H) == output[:, -1] of a 1-layer LSTM (zero init).

    matmul_dtype: optionally narrow ONLY the MXU operands (e.g. jnp.bfloat16 on
    v6e/v7x); f32 accumulation and f32 gate/state math are kept (v5e-safe).
    """
    B, T, D = x.shape
    H = w_hh.shape[1]                               # w_hh: (4H, H)
    out_dtype = x.dtype

    # One-time weight prep (tiny): pre-transpose so the in-kernel GEMMs are
    # (M, K) x (K, 4H) with 4H = 128 lane-dense outputs; fuse the two biases.
    wih_t = jnp.transpose(w_ih)                     # (D, 4H)
    whh_t = jnp.transpose(w_hh)                     # (H, 4H)
    bias = (b_ih + b_hh).reshape(1, 4 * H).astype(jnp.float32)

    if matmul_dtype is not None:                    # [R7] MXU-operand narrowing only
        x = x.astype(matmul_dtype)
        wih_t = wih_t.astype(matmul_dtype)
        whh_t = whh_t.astype(matmul_dtype)

    vmem = pltpu.MemorySpace.VMEM
    return pl.pallas_call(
        _lstm_last_kernel,
        out_shape=jax.ShapeDtypeStruct((B, H), out_dtype),
        # [R2]/[R10] No grid: one invocation, every operand fully resident in VMEM.
        in_specs=[
            pl.BlockSpec(memory_space=vmem),        # x        (B, T, D)
            pl.BlockSpec(memory_space=vmem),        # W_ih^T   (D, 4H)
            pl.BlockSpec(memory_space=vmem),        # W_hh^T   (H, 4H)
            pl.BlockSpec(memory_space=vmem),        # bias     (1, 4H)
        ],
        out_specs=pl.BlockSpec(memory_space=vmem),  # (B, H)
    )(x, wih_t, whh_t, bias)


def _lstm_reference(x, w_ih, w_hh, b_ih, b_hh):
    """Pure-JAX reference (lax.scan) of the same 1-layer LSTM, returns h_T."""
    B, T, D = x.shape
    H = w_hh.shape[1]
    wih_t = w_ih.T
    whh_t = w_hh.T
    bias = b_ih + b_hh

    def step(carry, x_t):
        h, c = carry
        gates = x_t @ wih_t + h @ whh_t + bias
        i = jax.nn.sigmoid(gates[:, 0 * H:1 * H])
        f = jax.nn.sigmoid(gates[:, 1 * H:2 * H])
        g = jnp.tanh(gates[:, 2 * H:3 * H])
        o = jax.nn.sigmoid(gates[:, 3 * H:4 * H])
        c = f * c + i * g
        h = o * jnp.tanh(c)
        return (h, c), None

    h0 = jnp.zeros((B, H), jnp.float32)
    c0 = jnp.zeros((B, H), jnp.float32)
    (hT, _), _ = lax.scan(step, (h0, c0), jnp.transpose(x, (1, 0, 2)))
    return hT


if __name__ == "__main__":
    # Module config: in_dim=32, num_hid=32, nlayers=1, bidirect=False, out='last_layer'
    B, T, D, H = 2, 8, 32, 32

    key = jax.random.PRNGKey(0)
    kx, k1, k2, k3, k4 = jax.random.split(key, 5)

    # Deterministic synthetic parameters, PyTorch-LSTM-style uniform(-1/sqrt(H), 1/sqrt(H)).
    s = 1.0 / jnp.sqrt(jnp.float32(H))
    w_ih = jax.random.uniform(k1, (4 * H, D), jnp.float32, -s, s)
    w_hh = jax.random.uniform(k2, (4 * H, H), jnp.float32, -s, s)
    b_ih = jax.random.uniform(k3, (4 * H,), jnp.float32, -s, s)
    b_hh = jax.random.uniform(k4, (4 * H,), jnp.float32, -s, s)

    x = jax.random.normal(kx, (B, T, D), jnp.float32)

    out = jax.block_until_ready(question_embedding_forward(x, w_ih, w_hh, b_ih, b_hh))
    ref = jax.block_until_ready(_lstm_reference(x, w_ih, w_hh, b_ih, b_hh))

    assert out.shape == (B, H)
    assert jnp.allclose(out, ref, atol=1e-5, rtol=1e-5), "kernel mismatch vs reference"

    print("KERNEL_OK")
</pallas_src>

<mosaic_0001>
module attributes {stable_mosaic.version = 11 : i64} {
  func.func @_lstm_last_kernel(%arg0: memref<2x8x32xf32, #tpu.memory_space<vmem>>, %arg1: memref<32x128xf32, #tpu.memory_space<vmem>>, %arg2: memref<32x128xf32, #tpu.memory_space<vmem>>, %arg3: memref<1x128xf32, #tpu.memory_space<vmem>>, %arg4: memref<2x32xf32, #tpu.memory_space<vmem>>) attributes {dimension_semantics = [], scalar_prefetch = 0 : i64, scratch_operands = 0 : i64, tpu.core_type = #tpu.core_type<tc>} {
    %c0 = arith.constant 0 : index
    %c0_0 = arith.constant 0 : index
    %c0_1 = arith.constant 0 : index
    %0 = vector.load %arg0[%c0, %c0_0, %c0_1] : memref<2x8x32xf32, #tpu.memory_space<vmem>>, vector<2x8x32xf32>
    %1 = vector.shape_cast %0 : vector<2x8x32xf32> to vector<16x32xf32>
    %c0_2 = arith.constant 0 : index
    %c0_3 = arith.constant 0 : index
    %2 = vector.load %arg1[%c0_2, %c0_3] : memref<32x128xf32, #tpu.memory_space<vmem>>, vector<32x128xf32>
    %cst = arith.constant dense<0.000000e+00> : vector<16x128xf32>
    %3 = tpu.matmul %1, %2, %cst {dimension_numbers = #tpu.dot_dimension_numbers<[1], [0], [0], [1], [0, 0, 1, 1], [], []>} : vector<16x32xf32>, vector<32x128xf32>, vector<16x128xf32> -> vector<16x128xf32>
    %c0_4 = arith.constant 0 : index
    %c0_5 = arith.constant 0 : index
    %4 = vector.load %arg3[%c0_4, %c0_5] : memref<1x128xf32, #tpu.memory_space<vmem>>, vector<1x128xf32>
    %5 = vector.broadcast %4 : vector<1x128xf32> to vector<16x128xf32>
    %6 = arith.addf %3, %5 : vector<16x128xf32>
    %7 = vector.shape_cast %6 : vector<16x128xf32> to vector<2x8x128xf32>
    %c0_6 = arith.constant 0 : index
    %c0_7 = arith.constant 0 : index
    %8 = vector.load %arg2[%c0_6, %c0_7] : memref<32x128xf32, #tpu.memory_space<vmem>>, vector<32x128xf32>
    %cst_8 = arith.constant 0.000000e+00 : f32
    %9 = vector.broadcast %cst_8 : f32 to vector<2x32xf32>
    %cst_9 = arith.constant 0.000000e+00 : f32
    %10 = vector.broadcast %cst_9 : f32 to vector<2x32xf32>
    %11 = vector.extract_strided_slice %7 {offsets = [0, 0, 0], sizes = [2, 1, 128], strides = [1, 1, 1]} : vector<2x8x128xf32> to vector<2x1x128xf32>
    %12 = vector.shape_cast %11 : vector<2x1x128xf32> to vector<2x128xf32>
    %cst_10 = arith.constant dense<0.000000e+00> : vector<2x128xf32>
    %13 = tpu.matmul %9, %8, %cst_10 {dimension_numbers = #tpu.dot_dimension_numbers<[1], [0], [0], [1], [0, 0, 1, 1], [], []>} : vector<2x32xf32>, vector<32x128xf32>, vector<2x128xf32> -> vector<2x128xf32>
    %14 = arith.addf %12, %13 : vector<2x128xf32>
    %15 = arith.negf %14 : vector<2x128xf32>
    %16 = math.exp %15 : vector<2x128xf32>
    %cst_11 = arith.constant 1.000000e+00 : f32
    %17 = vector.broadcast %cst_11 : f32 to vector<2x128xf32>
    %18 = arith.addf %17, %16 : vector<2x128xf32>
    %19 = arith.divf %17, %18 : vector<2x128xf32>
    %20 = math.tanh %14 : vector<2x128xf32>
    %21 = vector.extract_strided_slice %19 {offsets = [0, 0], sizes = [2, 32], strides = [1, 1]} : vector<2x128xf32> to vector<2x32xf32>
    %22 = vector.extract_strided_slice %19 {offsets = [0, 32], sizes = [2, 32], strides = [1, 1]} : vector<2x128xf32> to vector<2x32xf32>
    %23 = vector.extract_strided_slice %20 {offsets = [0, 64], sizes = [2, 32], strides = [1, 1]} : vector<2x128xf32> to vector<2x32xf32>
    %24 = vector.extract_strided_slice %19 {offsets = [0, 96], sizes = [2, 32], strides = [1, 1]} : vector<2x128xf32> to vector<2x32xf32>
    %25 = arith.mulf %22, %10 : vector<2x32xf32>
    %26 = arith.mulf %21, %23 : vector<2x32xf32>
    %27 = arith.addf %25, %26 : vector<2x32xf32>
    %28 = math.tanh %27 : vector<2x32xf32>
    %29 = arith.mulf %24, %28 : vector<2x32xf32>
    %30 = vector.extract_strided_slice %7 {offsets = [0, 1, 0], sizes = [2, 1, 128], strides = [1, 1, 1]} : vector<2x8x128xf32> to vector<2x1x128xf32>
    %31 = vector.shape_cast %30 : vector<2x1x128xf32> to vector<2x128xf32>
    %cst_12 = arith.constant dense<0.000000e+00> : vector<2x128xf32>
    %32 = tpu.matmul %29, %8, %cst_12 {dimension_numbers = #tpu.dot_dimension_numbers<[1], [0], [0], [1], [0, 0, 1, 1], [], []>} : vector<2x32xf32>, vector<32x128xf32>, vector<2x128xf32> -> vector<2x128xf32>
    %33 = arith.addf %31, %32 : vector<2x128xf32>
    %34 = arith.negf %33 : vector<2x128xf32>
    %35 = math.exp %34 : vector<2x128xf32>
    %cst_13 = arith.constant 1.000000e+00 : f32
    %36 = vector.broadcast %cst_13 : f32 to vector<2x128xf32>
    %37 = arith.addf %36, %35 : vector<2x128xf32>
    %38 = arith.divf %36, %37 : vector<2x128xf32>
    %39 = math.tanh %33 : vector<2x128xf32>
    %40 = vector.extract_strided_slice %38 {offsets = [0, 0], sizes = [2, 32], strides = [1, 1]} : vector<2x128xf32> to vector<2x32xf32>
    %41 = vector.extract_strided_slice %38 {offsets = [0, 32], sizes = [2, 32], strides = [1, 1]} : vector<2x128xf32> to vector<2x32xf32>
    %42 = vector.extract_strided_slice %39 {offsets = [0, 64], sizes = [2, 32], strides = [1, 1]} : vector<2x128xf32> to vector<2x32xf32>
    %43 = vector.extract_strided_slice %38 {offsets = [0, 96], sizes = [2, 32], strides = [1, 1]} : vector<2x128xf32> to vector<2x32xf32>
    %44 = arith.mulf %41, %27 : vector<2x32xf32>
    %45 = arith.mulf %40, %42 : vector<2x32xf32>
    %46 = arith.addf %44, %45 : vector<2x32xf32>
    %47 = math.tanh %46 : vector<2x32xf32>
    %48 = arith.mulf %43, %47 : vector<2x32xf32>
    %49 = vector.extract_strided_slice %7 {offsets = [0, 2, 0], sizes = [2, 1, 128], strides = [1, 1, 1]} : vector<2x8x128xf32> to vector<2x1x128xf32>
    %50 = vector.shape_cast %49 : vector<2x1x128xf32> to vector<2x128xf32>
    %cst_14 = arith.constant dense<0.000000e+00> : vector<2x128xf32>
    %51 = tpu.matmul %48, %8, %cst_14 {dimension_numbers = #tpu.dot_dimension_numbers<[1], [0], [0], [1], [0, 0, 1, 1], [], []>} : vector<2x32xf32>, vector<32x128xf32>, vector<2x128xf32> -> vector<2x128xf32>
    %52 = arith.addf %50, %51 : vector<2x128xf32>
    %53 = arith.negf %52 : vector<2x128xf32>
    %54 = math.exp %53 : vector<2x128xf32>
    %cst_15 = arith.constant 1.000000e+00 : f32
    %55 = vector.broadcast %cst_15 : f32 to vector<2x128xf32>
    %56 = arith.addf %55, %54 : vector<2x128xf32>
    %57 = arith.divf %55, %56 : vector<2x128xf32>
    %58 = math.tanh %52 : vector<2x128xf32>
    %59 = vector.extract_strided_slice %57 {offsets = [0, 0], sizes = [2, 32], strides = [1, 1]} : vector<2x128xf32> to vector<2x32xf32>
    %60 = vector.extract_strided_slice %57 {offsets = [0, 32], sizes = [2, 32], strides = [1, 1]} : vector<2x128xf32> to vector<2x32xf32>
    %61 = vector.extract_strided_slice %58 {offsets = [0, 64], sizes = [2, 32], strides = [1, 1]} : vector<2x128xf32> to vector<2x32xf32>
    %62 = vector.extract_strided_slice %57 {offsets = [0, 96], sizes = [2, 32], strides = [1, 1]} : vector<2x128xf32> to vector<2x32xf32>
    %63 = arith.mulf %60, %46 : vector<2x32xf32>
    %64 = arith.mulf %59, %61 : vector<2x32xf32>
    %65 = arith.addf %63, %64 : vector<2x32xf32>
    %66 = math.tanh %65 : vector<2x32xf32>
    %67 = arith.mulf %62, %66 : vector<2x32xf32>
    %68 = vector.extract_strided_slice %7 {offsets = [0, 3, 0], sizes = [2, 1, 128], strides = [1, 1, 1]} : vector<2x8x128xf32> to vector<2x1x128xf32>
    %69 = vector.shape_cast %68 : vector<2x1x128xf32> to vector<2x128xf32>
    %cst_16 = arith.constant dense<0.000000e+00> : vector<2x128xf32>
    %70 = tpu.matmul %67, %8, %cst_16 {dimension_numbers = #tpu.dot_dimension_numbers<[1], [0], [0], [1], [0, 0, 1, 1], [], []>} : vector<2x32xf32>, vector<32x128xf32>, vector<2x128xf32> -> vector<2x128xf32>
    %71 = arith.addf %69, %70 : vector<2x128xf32>
    %72 = arith.negf %71 : vector<2x128xf32>
    %73 = math.exp %72 : vector<2x128xf32>
    %cst_17 = arith.constant 1.000000e+00 : f32
    %74 = vector.broadcast %cst_17 : f32 to vector<2x128xf32>
    %75 = arith.addf %74, %73 : vector<2x128xf32>
    %76 = arith.divf %74, %75 : vector<2x128xf32>
    %77 = math.tanh %71 : vector<2x128xf32>
    %78 = vector.extract_strided_slice %76 {offsets = [0, 0], sizes = [2, 32], strides = [1, 1]} : vector<2x128xf32> to vector<2x32xf32>
    %79 = vector.extract_strided_slice %76 {offsets = [0, 32], sizes = [2, 32], strides = [1, 1]} : vector<2x128xf32> to vector<2x32xf32>
    %80 = vector.extract_strided_slice %77 {offsets = [0, 64], sizes = [2, 32], strides = [1, 1]} : vector<2x128xf32> to vector<2x32xf32>
    %81 = vector.extract_strided_slice %76 {offsets = [0, 96], sizes = [2, 32], strides = [1, 1]} : vector<2x128xf32> to vector<2x32xf32>
    %82 = arith.mulf %79, %65 : vector<2x32xf32>
    %83 = arith.mulf %78, %80 : vector<2x32xf32>
    %84 = arith.addf %82, %83 : vector<2x32xf32>
    %85 = math.tanh %84 : vector<2x32xf32>
    %86 = arith.mulf %81, %85 : vector<2x32xf32>
    %87 = vector.extract_strided_slice %7 {offsets = [0, 4, 0], sizes = [2, 1, 128], strides = [1, 1, 1]} : vector<2x8x128xf32> to vector<2x1x128xf32>
    %88 = vector.shape_cast %87 : vector<2x1x128xf32> to vector<2x128xf32>
    %cst_18 = arith.constant dense<0.000000e+00> : vector<2x128xf32>
    %89 = tpu.matmul %86, %8, %cst_18 {dimension_numbers = #tpu.dot_dimension_numbers<[1], [0], [0], [1], [0, 0, 1, 1], [], []>} : vector<2x32xf32>, vector<32x128xf32>, vector<2x128xf32> -> vector<2x128xf32>
    %90 = arith.addf %88, %89 : vector<2x128xf32>
    %91 = arith.negf %90 : vector<2x128xf32>
    %92 = math.exp %91 : vector<2x128xf32>
    %cst_19 = arith.constant 1.000000e+00 : f32
    %93 = vector.broadcast %cst_19 : f32 to vector<2x128xf32>
    %94 = arith.addf %93, %92 : vector<2x128xf32>
    %95 = arith.divf %93, %94 : vector<2x128xf32>
    %96 = math.tanh %90 : vector<2x128xf32>
    %97 = vector.extract_strided_slice %95 {offsets = [0, 0], sizes = [2, 32], strides = [1, 1]} : vector<2x128xf32> to vector<2x32xf32>
    %98 = vector.extract_strided_slice %95 {offsets = [0, 32], sizes = [2, 32], strides = [1, 1]} : vector<2x128xf32> to vector<2x32xf32>
    %99 = vector.extract_strided_slice %96 {offsets = [0, 64], sizes = [2, 32], strides = [1, 1]} : vector<2x128xf32> to vector<2x32xf32>
    %100 = vector.extract_strided_slice %95 {offsets = [0, 96], sizes = [2, 32], strides = [1, 1]} : vector<2x128xf32> to vector<2x32xf32>
    %101 = arith.mulf %98, %84 : vector<2x32xf32>
    %102 = arith.mulf %97, %99 : vector<2x32xf32>
    %103 = arith.addf %101, %102 : vector<2x32xf32>
    %104 = math.tanh %103 : vector<2x32xf32>
    %105 = arith.mulf %100, %104 : vector<2x32xf32>
    %106 = vector.extract_strided_slice %7 {offsets = [0, 5, 0], sizes = [2, 1, 128], strides = [1, 1, 1]} : vector<2x8x128xf32> to vector<2x1x128xf32>
    %107 = vector.shape_cast %106 : vector<2x1x128xf32> to vector<2x128xf32>
    %cst_20 = arith.constant dense<0.000000e+00> : vector<2x128xf32>
    %108 = tpu.matmul %105, %8, %cst_20 {dimension_numbers = #tpu.dot_dimension_numbers<[1], [0], [0], [1], [0, 0, 1, 1], [], []>} : vector<2x32xf32>, vector<32x128xf32>, vector<2x128xf32> -> vector<2x128xf32>
    %109 = arith.addf %107, %108 : vector<2x128xf32>
    %110 = arith.negf %109 : vector<2x128xf32>
    %111 = math.exp %110 : vector<2x128xf32>
    %cst_21 = arith.constant 1.000000e+00 : f32
    %112 = vector.broadcast %cst_21 : f32 to vector<2x128xf32>
    %113 = arith.addf %112, %111 : vector<2x128xf32>
    %114 = arith.divf %112, %113 : vector<2x128xf32>
    %115 = math.tanh %109 : vector<2x128xf32>
    %116 = vector.extract_strided_slice %114 {offsets = [0, 0], sizes = [2, 32], strides = [1, 1]} : vector<2x128xf32> to vector<2x32xf32>
    %117 = vector.extract_strided_slice %114 {offsets = [0, 32], sizes = [2, 32], strides = [1, 1]} : vector<2x128xf32> to vector<2x32xf32>
    %118 = vector.extract_strided_slice %115 {offsets = [0, 64], sizes = [2, 32], strides = [1, 1]} : vector<2x128xf32> to vector<2x32xf32>
    %119 = vector.extract_strided_slice %114 {offsets = [0, 96], sizes = [2, 32], strides = [1, 1]} : vector<2x128xf32> to vector<2x32xf32>
    %120 = arith.mulf %117, %103 : vector<2x32xf32>
    %121 = arith.mulf %116, %118 : vector<2x32xf32>
    %122 = arith.addf %120, %121 : vector<2x32xf32>
    %123 = math.tanh %122 : vector<2x32xf32>
    %124 = arith.mulf %119, %123 : vector<2x32xf32>
    %125 = vector.extract_strided_slice %7 {offsets = [0, 6, 0], sizes = [2, 1, 128], strides = [1, 1, 1]} : vector<2x8x128xf32> to vector<2x1x128xf32>
    %126 = vector.shape_cast %125 : vector<2x1x128xf32> to vector<2x128xf32>
    %cst_22 = arith.constant dense<0.000000e+00> : vector<2x128xf32>
    %127 = tpu.matmul %124, %8, %cst_22 {dimension_numbers = #tpu.dot_dimension_numbers<[1], [0], [0], [1], [0, 0, 1, 1], [], []>} : vector<2x32xf32>, vector<32x128xf32>, vector<2x128xf32> -> vector<2x128xf32>
    %128 = arith.addf %126, %127 : vector<2x128xf32>
    %129 = arith.negf %128 : vector<2x128xf32>
    %130 = math.exp %129 : vector<2x128xf32>
    %cst_23 = arith.constant 1.000000e+00 : f32
    %131 = vector.broadcast %cst_23 : f32 to vector<2x128xf32>
    %132 = arith.addf %131, %130 : vector<2x128xf32>
    %133 = arith.divf %131, %132 : vector<2x128xf32>
    %134 = math.tanh %128 : vector<2x128xf32>
    %135 = vector.extract_strided_slice %133 {offsets = [0, 0], sizes = [2, 32], strides = [1, 1]} : vector<2x128xf32> to vector<2x32xf32>
    %136 = vector.extract_strided_slice %133 {offsets = [0, 32], sizes = [2, 32], strides = [1, 1]} : vector<2x128xf32> to vector<2x32xf32>
    %137 = vector.extract_strided_slice %134 {offsets = [0, 64], sizes = [2, 32], strides = [1, 1]} : vector<2x128xf32> to vector<2x32xf32>
    %138 = vector.extract_strided_slice %133 {offsets = [0, 96], sizes = [2, 32], strides = [1, 1]} : vector<2x128xf32> to vector<2x32xf32>
    %139 = arith.mulf %136, %122 : vector<2x32xf32>
    %140 = arith.mulf %135, %137 : vector<2x32xf32>
    %141 = arith.addf %139, %140 : vector<2x32xf32>
    %142 = math.tanh %141 : vector<2x32xf32>
    %143 = arith.mulf %138, %142 : vector<2x32xf32>
    %144 = vector.extract_strided_slice %7 {offsets = [0, 7, 0], sizes = [2, 1, 128], strides = [1, 1, 1]} : vector<2x8x128xf32> to vector<2x1x128xf32>
    %145 = vector.shape_cast %144 : vector<2x1x128xf32> to vector<2x128xf32>
    %cst_24 = arith.constant dense<0.000000e+00> : vector<2x128xf32>
    %146 = tpu.matmul %143, %8, %cst_24 {dimension_numbers = #tpu.dot_dimension_numbers<[1], [0], [0], [1], [0, 0, 1, 1], [], []>} : vector<2x32xf32>, vector<32x128xf32>, vector<2x128xf32> -> vector<2x128xf32>
    %147 = arith.addf %145, %146 : vector<2x128xf32>
    %148 = arith.negf %147 : vector<2x128xf32>
    %149 = math.exp %148 : vector<2x128xf32>
    %cst_25 = arith.constant 1.000000e+00 : f32
    %150 = vector.broadcast %cst_25 : f32 to vector<2x128xf32>
    %151 = arith.addf %150, %149 : vector<2x128xf32>
    %152 = arith.divf %150, %151 : vector<2x128xf32>
    %153 = math.tanh %147 : vector<2x128xf32>
    %154 = vector.extract_strided_slice %152 {offsets = [0, 0], sizes = [2, 32], strides = [1, 1]} : vector<2x128xf32> to vector<2x32xf32>
    %155 = vector.extract_strided_slice %152 {offsets = [0, 32], sizes = [2, 32], strides = [1, 1]} : vector<2x128xf32> to vector<2x32xf32>
    %156 = vector.extract_strided_slice %153 {offsets = [0, 64], sizes = [2, 32], strides = [1, 1]} : vector<2x128xf32> to vector<2x32xf32>
    %157 = vector.extract_strided_slice %152 {offsets = [0, 96], sizes = [2, 32], strides = [1, 1]} : vector<2x128xf32> to vector<2x32xf32>
    %158 = arith.mulf %155, %141 : vector<2x32xf32>
    %159 = arith.mulf %154, %156 : vector<2x32xf32>
    %160 = arith.addf %158, %159 : vector<2x32xf32>
    %161 = math.tanh %160 : vector<2x32xf32>
    %162 = arith.mulf %157, %161 : vector<2x32xf32>
    %c0_26 = arith.constant 0 : index
    %c0_27 = arith.constant 0 : index
    %163 = vector.load %arg4[%c0_26, %c0_27] : memref<2x32xf32, #tpu.memory_space<vmem>>, vector<2x32xf32>
    tpu.vector_store %arg4[%c0_26, %c0_27], %162 {strides = array<i32>} : memref<2x32xf32, #tpu.memory_space<vmem>>, vector<2x32xf32>,
    return
  }
}

</mosaic_0001>

<llo_original>
// kernel: tpu_custom_call.1
$region0: #{tpu_custom_call.1}
  #allocation0 [shape = 'u32[]', space=smem, size = 0x4, offset = 0x4, fixed_abs, tag = 'smem constant byte address 0x4 - core index']
  #allocation1 [shape = 'u32[144,128]{1,0:T(1,128)}', space=vmem, size = 0x12000, scoped, tag = 'internal scratch']
  %s0 = inlined_call_operand.hbm [shape: f32[2,8,32], index: 0, kind: input, shape index: {}]
  %s1 = inlined_call_operand.hbm [shape: f32[32,128], index: 1, kind: input, shape index: {}]
  %s2 = inlined_call_operand.hbm [shape: f32[32,128], index: 2, kind: input, shape index: {}]
  %s3 = inlined_call_operand.vmem [shape: f32[1,128], index: 3, kind: input, shape index: {}]
  %s4 = inlined_call_operand.hbm [shape: f32[2,32], index: 4, kind: output, shape index: {}]
  %s5 = sld [smem:[#allocation0]]
  $region38: #{tpu_custom_call.1} parent=0
    _
  %s7 = ssub.s32 1, %s5
  %s8 = scalar_select 0, %s7, %s5
  $region1: #{tpu_custom_call.1} parent=0
    #allocation2 [shape = 'u8[8192]{0}', space=vmem, size = 0x2000, scoped, tag = 'input window, operand 0, single buffered']
    #allocation3 [shape = 's32[1]{0}', space=sflag, size = 0x4, scoped, tag = 'scoped memory for tpu_custom_call.1']
    #allocation4 [shape = 's32[1]{0}', space=sflag, size = 0x4, scoped, tag = 'scoped memory for tpu_custom_call.1']
    #allocation5 [shape = 'u8[16384]{0}', space=vmem, size = 0x4000, scoped, tag = 'input window, operand 1, single buffered']
    #allocation6 [shape = 's32[1]{0}', space=sflag, size = 0x4, scoped, tag = 'scoped memory for tpu_custom_call.1']
    #allocation7 [shape = 'u8[16384]{0}', space=vmem, size = 0x4000, scoped, tag = 'input window, operand 2, single buffered']
    #allocation8 [shape = 'u8[1024]{0}', space=vmem, size = 0x400, scoped, tag = 'output window, operand 0, single buffered']
    %9 = vsyncpa [#allocation3], 0
    %10 = vsyncpa [#allocation6], 0
    %11 = vsyncpa [#allocation4], 0
    // Predicated region
    $region2: #{tpu_custom_call.1} parent=1 // pred_check
      _
    $region3: #{tpu_custom_call.1} parent=1 // pred_check_branch
      %13 = sbr.rel (0) target = $region5
    $region4: #{tpu_custom_call.1} parent=1 // pred_region
      %s15 = ssub.s32 256, 256
      %16 = vsyncadd [#allocation3], %s15
      %s17 = sshll.u32 [#allocation2], 4
      %s18 = int_to_ptr.vmem [resolvable:$true] %s17
      %23 = dma.hbm_to_vmem [thread:$0]  %s0, 256, %s18, [#allocation3], 128, 128, 8
    $region5: #{tpu_custom_call.1} parent=1 // pred_fallthru
      _
    // Predicated region
    $region6: #{tpu_custom_call.1} parent=1 // pred_check
      _
    $region7: #{tpu_custom_call.1} parent=1 // pred_check_branch
      %25 = sbr.rel (0) target = $region9
    $region8: #{tpu_custom_call.1} parent=1 // pred_region
      %s27 = ssub.s32 512, 512
      %28 = vsyncadd [#allocation6], %s27
      %s29 = sshll.u32 [#allocation5], 4
      %s30 = int_to_ptr.vmem [resolvable:$true] %s29
      %35 = dma.hbm_to_vmem [thread:$0]  %s1, 512, %s30, [#allocation6], 128, 128, 8
    $region9: #{tpu_custom_call.1} parent=1 // pred_fallthru
      _
    // Predicated region
    $region10: #{tpu_custom_call.1} parent=1 // pred_check
      _
    $region11: #{tpu_custom_call.1} parent=1 // pred_check_branch
      %37 = sbr.rel (0) target = $region13
    $region12: #{tpu_custom_call.1} parent=1 // pred_region
      %s39 = ssub.s32 512, 512
      %40 = vsyncadd [#allocation6], %s39
      %s41 = sshll.u32 [#allocation7], 4
      %s42 = int_to_ptr.vmem [resolvable:$true] %s41
      %47 = dma.hbm_to_vmem [thread:$0]  %s2, 512, %s42, [#allocation6], 128, 128, 8
    $region13: #{tpu_custom_call.1} parent=1 // pred_fallthru
      _
    // Predicated region
    $region14: #{tpu_custom_call.1} parent=1 // pred_check
      _
    $region15: #{tpu_custom_call.1} parent=1 // pred_check_branch
      %49 = sbr.rel (0) target = $region17
    $region16: #{tpu_custom_call.1} parent=1 // pred_region
      _
    $region17: #{tpu_custom_call.1} parent=1 // pred_fallthru
      _
    // Predicated region
    $region18: #{tpu_custom_call.1} parent=1 // pred_check
      _
    $region19: #{tpu_custom_call.1} parent=1 // pred_check_branch
      %51 = sbr.rel (0) target = $region21
    $region20: #{tpu_custom_call.1} parent=1 // pred_region
      %52 = dma.done [#allocation3], 256
    $region21: #{tpu_custom_call.1} parent=1 // pred_fallthru
      _
    // Predicated region
    $region22: #{tpu_custom_call.1} parent=1 // pred_check
      _
    $region23: #{tpu_custom_call.1} parent=1 // pred_check_branch
      %54 = sbr.rel (0) target = $region25
    $region24: #{tpu_custom_call.1} parent=1 // pred_region
      %55 = dma.done [#allocation6], 512
    $region25: #{tpu_custom_call.1} parent=1 // pred_fallthru
      _
    // Predicated region
    $region26: #{tpu_custom_call.1} parent=1 // pred_check
      _
    $region27: #{tpu_custom_call.1} parent=1 // pred_check_branch
      %57 = sbr.rel (0) target = $region29
    $region28: #{tpu_custom_call.1} parent=1 // pred_region
      %58 = dma.done [#allocation6], 512
    $region29: #{tpu_custom_call.1} parent=1 // pred_fallthru
      _
    %v59 = vld [vmem:[#allocation2] sm:$0xff]
    %v60 = vld [vmem:[#allocation2 + $0x8] sm:$0xff]
    %v61 = vld [vmem:[#allocation5] sm:$0xff]
    %v62 = vld [vmem:[#allocation5 + $0x8] sm:$0xff]
    %v63 = vld [vmem:[#allocation5 + $0x10] sm:$0xff]
    %v64 = vld [vmem:[#allocation5 + $0x18] sm:$0xff]
    %v65 = vld [vmem:[%s3] sm:$0x1]
    %v67 = vlaneseq
    %v68 = vshrl.u32 %v67, 7
    %v69 = vsub.s32 0, %v68
    %v70 = vrot.slane %v65, %v69
    %vm72 = vcmask 261120
    %v74 = vsel %vm72, %v59, 0
    %v77 = vsel %vm72, %v60, 0
    %79 = vmatprep.subr.mxu0 0.0
    %80 = vmatpush1.msra.mxu0 %v61
    %81 = vmatprep.subr.mxu0 0.0
    %82 = vmatpush1.msra.mxu0 %v62
    %83 = vmatprep.subr.mxu0 0.0
    %84 = vmatpush1.msra.mxu0 %v63
    %85 = vmatprep.subr.mxu0 0.0
    %86 = vmatpush1.msra.mxu0 %v64
    %87 = vmatprep.subr.mxu0 0.0
    %88 = vmatpush1.msra.mxu0 0.0
    %89 = vmatprep.subr.mxu0 0.0
    %90 = vmatpush1.msra.mxu0 0.0
    %91 = vmatprep.subr.mxu0 0.0
    %92 = vmatpush1.msra.mxu0 0.0
    %93 = vmatprep.subr.mxu0 0.0
    %94 = vmatpush1.msra.mxu0 0.0
    %95 = vmatprep.subr.mxu0 0.0
    %96 = vmatpush1.msra.mxu0 0.0
    %97 = vmatprep.subr.mxu0 0.0
    %98 = vmatpush1.msra.mxu0 0.0
    %99 = vmatprep.subr.mxu0 0.0
    %100 = vmatpush1.msra.mxu0 0.0
    %101 = vmatprep.subr.mxu0 0.0
    %102 = vmatpush1.msra.mxu0 0.0
    %103 = vmatprep.subr.mxu0 0.0
    %104 = vmatpush1.msra.mxu0 0.0
    %105 = vmatprep.subr.mxu0 0.0
    %106 = vmatpush1.msra.mxu0 0.0
    %107 = vmatprep.subr.mxu0 0.0
    %108 = vmatpush1.msra.mxu0 0.0
    %109 = vmatprep.subr.mxu0 0.0
    %110 = vmatpush1.msra.mxu0 0.0
    %111 = vmatprep.subr.mxu0 0.0
    %112 = vmatpush1.msra.mxu0 0.0
    %113 = vmatprep.subr.mxu0 0.0
    %114 = vmatpush1.msra.mxu0 0.0
    %115 = vmatprep.subr.mxu0 0.0
    %116 = vmatpush1.msra.mxu0 0.0
    %117 = vmatprep.subr.mxu0 0.0
    %118 = vmatpush1.msra.mxu0 0.0
    %119 = vmatprep.subr.mxu0 0.0
    %120 = vmatpush1.msra.mxu0 0.0
    %121 = vmatprep.subr.mxu0 0.0
    %122 = vmatpush1.msra.mxu0 0.0
    %123 = vmatprep.subr.mxu0 0.0
    %124 = vmatpush1.msra.mxu0 0.0
    %125 = vmatprep.subr.mxu0 0.0
    %126 = vmatpush1.msra.mxu0 0.0
    %127 = vmatprep.subr.mxu0 0.0
    %128 = vmatpush1.msra.mxu0 0.0
    %129 = vmatprep.subr.mxu0 0.0
    %130 = vmatpush1.msra.mxu0 0.0
    %131 = vmatprep.subr.mxu0 0.0
    %132 = vmatpush1.msra.mxu0 0.0
    %133 = vmatprep.subr.mxu0 0.0
    %134 = vmatpush1.msra.mxu0 0.0
    %135 = vmatprep.subr.mxu0 0.0
    %136 = vmatpush1.msra.mxu0 0.0
    %137 = vmatprep.subr.mxu0 0.0
    %138 = vmatpush1.msra.mxu0 0.0
    %139 = vmatprep.subr.mxu0 0.0
    %140 = vmatpush1.msra.mxu0 0.0
    %141 = vmatprep.subr.mxu0 0.0
    %142 = vmatpush1.msra.mxu0 0.0
    %143 = vmatprep.mubr.f32.mxu0 0.0
    %144 = vmatmul.mubr.f32.gmra.mrb[0].mxu0 %v74
    %v145 = vpop.f32.mrb[0].mxu0
    %v146 = vadd.f32 %v70, %v145
    %v147 = vpop.f32.mrb[0].mxu0
    %148 = vmatprep.mubr.f32.mxu0 0.0
    %149 = vmatmul.mubr.f32.gmra.mrb[0].mxu0 %v77
    %v150 = vpop.f32.mrb[0].mxu0
    %v151 = vadd.f32 %v70, %v150
    %v152 = vpop.f32.mrb[0].mxu0
    %153 = vdwg.mxu0
    %v154 = vld [vmem:[#allocation7] sm:$0xff]
    %v155 = vld [vmem:[#allocation7 + $0x8] sm:$0xff]
    %v156 = vld [vmem:[#allocation7 + $0x10] sm:$0xff]
    %v157 = vld [vmem:[#allocation7 + $0x18] sm:$0xff]
    %v159 = vsel %vm72, 0.0, 0
    %161 = vmatprep.subr.mxu0 0.0
    %162 = vmatpush1.msra.mxu0 %v154
    %163 = vmatprep.subr.mxu0 0.0
    %164 = vmatpush1.msra.mxu0 %v155
    %165 = vmatprep.subr.mxu0 0.0
    %166 = vmatpush1.msra.mxu0 %v156
    %167 = vmatprep.subr.mxu0 0.0
    %168 = vmatpush1.msra.mxu0 %v157
    %169 = vmatprep.subr.mxu0 0.0
    %170 = vmatpush1.msra.mxu0 0.0
    %171 = vmatprep.subr.mxu0 0.0
    %172 = vmatpush1.msra.mxu0 0.0
    %173 = vmatprep.subr.mxu0 0.0
    %174 = vmatpush1.msra.mxu0 0.0
    %175 = vmatprep.subr.mxu0 0.0
    %176 = vmatpush1.msra.mxu0 0.0
    %177 = vmatprep.subr.mxu0 0.0
    %178 = vmatpush1.msra.mxu0 0.0
    %179 = vmatprep.subr.mxu0 0.0
    %180 = vmatpush1.msra.mxu0 0.0
    %181 = vmatprep.subr.mxu0 0.0
    %182 = vmatpush1.msra.mxu0 0.0
    %183 = vmatprep.subr.mxu0 0.0
    %184 = vmatpush1.msra.mxu0 0.0
    %185 = vmatprep.subr.mxu0 0.0
    %186 = vmatpush1.msra.mxu0 0.0
    %187 = vmatprep.subr.mxu0 0.0
    %188 = vmatpush1.msra.mxu0 0.0
    %189 = vmatprep.subr.mxu0 0.0
    %190 = vmatpush1.msra.mxu0 0.0
    %191 = vmatprep.subr.mxu0 0.0
    %192 = vmatpush1.msra.mxu0 0.0
    %193 = vmatprep.subr.mxu0 0.0
    %194 = vmatpush1.msra.mxu0 0.0
    %195 = vmatprep.subr.mxu0 0.0
    %196 = vmatpush1.msra.mxu0 0.0
    %197 = vmatprep.subr.mxu0 0.0
    %198 = vmatpush1.msra.mxu0 0.0
    %199 = vmatprep.subr.mxu0 0.0
    %200 = vmatpush1.msra.mxu0 0.0
    %201 = vmatprep.subr.mxu0 0.0
    %202 = vmatpush1.msra.mxu0 0.0
    %203 = vmatprep.subr.mxu0 0.0
    %204 = vmatpush1.msra.mxu0 0.0
    %205 = vmatprep.subr.mxu0 0.0
    %206 = vmatpush1.msra.mxu0 0.0
    %207 = vmatprep.subr.mxu0 0.0
    %208 = vmatpush1.msra.mxu0 0.0
    %209 = vmatprep.subr.mxu0 0.0
    %210 = vmatpush1.msra.mxu0 0.0
    %211 = vmatprep.subr.mxu0 0.0
    %212 = vmatpush1.msra.mxu0 0.0
    %213 = vmatprep.subr.mxu0 0.0
    %214 = vmatpush1.msra.mxu0 0.0
    %215 = vmatprep.subr.mxu0 0.0
    %216 = vmatpush1.msra.mxu0 0.0
    %217 = vmatprep.subr.mxu0 0.0
    %218 = vmatpush1.msra.mxu0 0.0
    %219 = vmatprep.subr.mxu0 0.0
    %220 = vmatpush1.msra.mxu0 0.0
    %221 = vmatprep.subr.mxu0 0.0
    %222 = vmatpush1.msra.mxu0 0.0
    %223 = vmatprep.subr.mxu0 0.0
    %224 = vmatpush1.msra.mxu0 0.0
    %225 = vmatprep.mubr.f32.mxu0 0.0
    %226 = vmatmul.mubr.f32.gmra.mrb[0].mxu0 %v159
    %v227 = vpop.f32.mrb[0].mxu0
    %v228 = vadd.f32 0.0, %v227
    %v229 = vpop.f32.mrb[0].mxu0
    %230 = vdwg.mxu0
    %v232 = vrot.slane %v228, 1
    %v235 = vadd.f32 %v146, %v228
    %v236 = vadd.f32 %v151, %v232
    %v237 = vxor.u32 %v235, 2147483648
    %v238 = vxor.u32 %v236, 2147483648
    %v239 = vmul.f32 %v237, 1.442695
    %v240 = vpow.pop %v239
    %v241 = vmul.f32 %v238, 1.442695
    %v242 = vpow.pop %v241
    %v243 = vadd.f32 %v240, 1.0
    %v244 = vadd.f32 %v242, 1.0
    %v245 = vrcp.pop %v243
    %v246 = vmul.f32 1.0, %v245
    %v247 = vrcp.pop %v244
    %v248 = vmul.f32 1.0, %v247
    %v249 = vtanh.pop %v235
    %v250 = vtanh.pop %v236
    %v251 = vmul.f32 %v246, 0.0
    %v252 = vmul.f32 %v248, 0.0
    %255 = vrot.lane.b32.xlu0 %v249, 64
    %v256 = vpop.permute.xlu0 %255
    %257 = vrot.lane.b32.xlu0 %v250, 64
    %v258 = vpop.permute.xlu0 %257
    %v261 = vmul.f32 %v246, %v256
    %v262 = vmul.f32 %v248, %v258
    %265 = vrot.lane.b32.xlu0 %v261, 32
    %v266 = vpop.permute.xlu0 %265
    %267 = vrot.lane.b32.xlu0 %v262, 32
    %v268 = vpop.permute.xlu0 %267
    %v271 = vadd.f32 %v251, %v266
    %v272 = vadd.f32 %v252, %v268
    %v273 = vtanh.pop %v271
    %v274 = vtanh.pop %v272
    %277 = vrot.lane.b32.xlu0 %v273, 64
    %v278 = vpop.permute.xlu0 %277
    %279 = vrot.lane.b32.xlu0 %v274, 64
    %v280 = vpop.permute.xlu0 %279
    %v283 = vmul.f32 %v246, %v278
    %v284 = vmul.f32 %v248, %v280
    %v287 = vrot.slane %v284, 7
    %vm288 = vcmask 1041409
    %v289 = vsel %vm288, %v287, %v283
    %290 = vrot.lane.b32.xlu0 %v289, 32
    %v291 = vpop.permute.xlu0 %290
    %v292 = vsel %vm72, %v291, 0
    %294 = vmatprep.subr.mxu0 0.0
    %295 = vmatpush1.msra.mxu0 %v154
    %296 = vmatprep.subr.mxu0 0.0
    %297 = vmatpush1.msra.mxu0 %v155
    %298 = vmatprep.subr.mxu0 0.0
    %299 = vmatpush1.msra.mxu0 %v156
    %300 = vmatprep.subr.mxu0 0.0
    %301 = vmatpush1.msra.mxu0 %v157
    %302 = vmatprep.subr.mxu0 0.0
    %303 = vmatpush1.msra.mxu0 0.0
    %304 = vmatprep.subr.mxu0 0.0
    %305 = vmatpush1.msra.mxu0 0.0
    %306 = vmatprep.subr.mxu0 0.0
    %307 = vmatpush1.msra.mxu0 0.0
    %308 = vmatprep.subr.mxu0 0.0
    %309 = vmatpush1.msra.mxu0 0.0
    %310 = vmatprep.subr.mxu0 0.0
    %311 = vmatpush1.msra.mxu0 0.0
    %312 = vmatprep.subr.mxu0 0.0
    %313 = vmatpush1.msra.mxu0 0.0
    %314 = vmatprep.subr.mxu0 0.0
    %315 = vmatpush1.msra.mxu0 0.0
    %316 = vmatprep.subr.mxu0 0.0
    %317 = vmatpush1.msra.mxu0 0.0
    %318 = vmatprep.subr.mxu0 0.0
    %319 = vmatpush1.msra.mxu0 0.0
    %320 = vmatprep.subr.mxu0 0.0
    %321 = vmatpush1.msra.mxu0 0.0
    %322 = vmatprep.subr.mxu0 0.0
    %323 = vmatpush1.msra.mxu0 0.0
    %324 = vmatprep.subr.mxu0 0.0
    %325 = vmatpush1.msra.mxu0 0.0
    %326 = vmatprep.subr.mxu0 0.0
    %327 = vmatpush1.msra.mxu0 0.0
    %328 = vmatprep.subr.mxu0 0.0
    %329 = vmatpush1.msra.mxu0 0.0
    %330 = vmatprep.subr.mxu0 0.0
    %331 = vmatpush1.msra.mxu0 0.0
    %332 = vmatprep.subr.mxu0 0.0
    %333 = vmatpush1.msra.mxu0 0.0
    %334 = vmatprep.subr.mxu0 0.0
    %335 = vmatpush1.msra.mxu0 0.0
    %336 = vmatprep.subr.mxu0 0.0
    %337 = vmatpush1.msra.mxu0 0.0
    %338 = vmatprep.subr.mxu0 0.0
    %339 = vmatpush1.msra.mxu0 0.0
    %340 = vmatprep.subr.mxu0 0.0
    %341 = vmatpush1.msra.mxu0 0.0
    %342 = vmatprep.subr.mxu0 0.0
    %343 = vmatpush1.msra.mxu0 0.0
    %344 = vmatprep.subr.mxu0 0.0
    %345 = vmatpush1.msra.mxu0 0.0
    %346 = vmatprep.subr.mxu0 0.0
    %347 = vmatpush1.msra.mxu0 0.0
    %348 = vmatprep.subr.mxu0 0.0
    %349 = vmatpush1.msra.mxu0 0.0
    %350 = vmatprep.subr.mxu0 0.0
    %351 = vmatpush1.msra.mxu0 0.0
    %352 = vmatprep.subr.mxu0 0.0
    %353 = vmatpush1.msra.mxu0 0.0
    %354 = vmatprep.subr.mxu0 0.0
    %355 = vmatpush1.msra.mxu0 0.0
    %356 = vmatprep.subr.mxu0 0.0
    %357 = vmatpush1.msra.mxu0 0.0
    %358 = vmatprep.mubr.f32.mxu0 0.0
    %359 = vmatmul.mubr.f32.gmra.mrb[0].mxu0 %v292
    %v360 = vpop.f32.mrb[0].mxu0
    %v361 = vadd.f32 0.0, %v360
    %v362 = vpop.f32.mrb[0].mxu0
    %363 = vdwg.mxu0
    %v365 = vrot.slane %v361, 7
    %v368 = vadd.f32 %v146, %v365
    %v369 = vadd.f32 %v151, %v361
    %v370 = vxor.u32 %v368, 2147483648
    %v371 = vxor.u32 %v369, 2147483648
    %v372 = vmul.f32 %v370, 1.442695
    %v373 = vpow.pop %v372
    %v374 = vmul.f32 %v371, 1.442695
    %v375 = vpow.pop %v374
    %v376 = vadd.f32 %v373, 1.0
    %v377 = vadd.f32 %v375, 1.0
    %v378 = vrcp.pop %v376
    %v379 = vmul.f32 1.0, %v378
    %v380 = vrcp.pop %v377
    %v381 = vmul.f32 1.0, %v380
    %v382 = vtanh.pop %v368
    %v383 = vtanh.pop %v369
    %v386 = vrot.slane %v271, 7
    %v387 = vrot.slane %v272, 7
    %v390 = vmul.f32 %v379, %v386
    %v391 = vmul.f32 %v381, %v387
    %394 = vrot.lane.b32.xlu0 %v382, 64
    %v395 = vpop.permute.xlu0 %394
    %396 = vrot.lane.b32.xlu0 %v383, 64
    %v397 = vpop.permute.xlu0 %396
    %v400 = vmul.f32 %v379, %v395
    %v401 = vmul.f32 %v381, %v397
    %404 = vrot.lane.b32.xlu0 %v400, 32
    %v405 = vpop.permute.xlu0 %404
    %406 = vrot.lane.b32.xlu0 %v401, 32
    %v407 = vpop.permute.xlu0 %406
    %v410 = vadd.f32 %v390, %v405
    %v411 = vadd.f32 %v391, %v407
    %v412 = vtanh.pop %v410
    %v413 = vtanh.pop %v411
    %416 = vrot.lane.b32.xlu0 %v412, 64
    %v417 = vpop.permute.xlu0 %416
    %418 = vrot.lane.b32.xlu0 %v413, 64
    %v419 = vpop.permute.xlu0 %418
    %v422 = vmul.f32 %v379, %v417
    %v423 = vmul.f32 %v381, %v419
    %v426 = vrot.slane %v422, 1
    %v427 = vsel %vm288, %v423, %v426
    %428 = vrot.lane.b32.xlu0 %v427, 32
    %v429 = vpop.permute.xlu0 %428
    %v430 = vsel %vm72, %v429, 0
    %432 = vmatprep.subr.mxu0 0.0
    %433 = vmatpush1.msra.mxu0 %v154
    %434 = vmatprep.subr.mxu0 0.0
    %435 = vmatpush1.msra.mxu0 %v155
    %436 = vmatprep.subr.mxu0 0.0
    %437 = vmatpush1.msra.mxu0 %v156
    %438 = vmatprep.subr.mxu0 0.0
    %439 = vmatpush1.msra.mxu0 %v157
    %440 = vmatprep.subr.mxu0 0.0
    %441 = vmatpush1.msra.mxu0 0.0
    %442 = vmatprep.subr.mxu0 0.0
    %443 = vmatpush1.msra.mxu0 0.0
    %444 = vmatprep.subr.mxu0 0.0
    %445 = vmatpush1.msra.mxu0 0.0
    %446 = vmatprep.subr.mxu0 0.0
    %447 = vmatpush1.msra.mxu0 0.0
    %448 = vmatprep.subr.mxu0 0.0
    %449 = vmatpush1.msra.mxu0 0.0
    %450 = vmatprep.subr.mxu0 0.0
    %451 = vmatpush1.msra.mxu0 0.0
    %452 = vmatprep.subr.mxu0 0.0
    %453 = vmatpush1.msra.mxu0 0.0
    %454 = vmatprep.subr.mxu0 0.0
    %455 = vmatpush1.msra.mxu0 0.0
    %456 = vmatprep.subr.mxu0 0.0
    %457 = vmatpush1.msra.mxu0 0.0
    %458 = vmatprep.subr.mxu0 0.0
    %459 = vmatpush1.msra.mxu0 0.0
    %460 = vmatprep.subr.mxu0 0.0
    %461 = vmatpush1.msra.mxu0 0.0
    %462 = vmatprep.subr.mxu0 0.0
    %463 = vmatpush1.msra.mxu0 0.0
    %464 = vmatprep.subr.mxu0 0.0
    %465 = vmatpush1.msra.mxu0 0.0
    %466 = vmatprep.subr.mxu0 0.0
    %467 = vmatpush1.msra.mxu0 0.0
    %468 = vmatprep.subr.mxu0 0.0
    %469 = vmatpush1.msra.mxu0 0.0
    %470 = vmatprep.subr.mxu0 0.0
    %471 = vmatpush1.msra.mxu0 0.0
    %472 = vmatprep.subr.mxu0 0.0
    %473 = vmatpush1.msra.mxu0 0.0
    %474 = vmatprep.subr.mxu0 0.0
    %475 = vmatpush1.msra.mxu0 0.0
    %476 = vmatprep.subr.mxu0 0.0
    %477 = vmatpush1.msra.mxu0 0.0
    %478 = vmatprep.subr.mxu0 0.0
    %479 = vmatpush1.msra.mxu0 0.0
    %480 = vmatprep.subr.mxu0 0.0
    %481 = vmatpush1.msra.mxu0 0.0
    %482 = vmatprep.subr.mxu0 0.0
    %483 = vmatpush1.msra.mxu0 0.0
    %484 = vmatprep.subr.mxu0 0.0
    %485 = vmatpush1.msra.mxu0 0.0
    %486 = vmatprep.subr.mxu0 0.0
    %487 = vmatpush1.msra.mxu0 0.0
    %488 = vmatprep.subr.mxu0 0.0
    %489 = vmatpush1.msra.mxu0 0.0
    %490 = vmatprep.subr.mxu0 0.0
    %491 = vmatpush1.msra.mxu0 0.0
    %492 = vmatprep.subr.mxu0 0.0
    %493 = vmatpush1.msra.mxu0 0.0
    %494 = vmatprep.subr.mxu0 0.0
    %495 = vmatpush1.msra.mxu0 0.0
    %496 = vmatprep.mubr.f32.mxu0 0.0
    %497 = vmatmul.mubr.f32.gmra.mrb[0].mxu0 %v430
    %v498 = vpop.f32.mrb[0].mxu0
    %v499 = vadd.f32 0.0, %v498
    %v500 = vpop.f32.mrb[0].mxu0
    %501 = vdwg.mxu0
    %v503 = vrot.slane %v499, 6
    %v504 = vrot.slane %v499, 7
    %v507 = vadd.f32 %v146, %v503
    %v508 = vadd.f32 %v151, %v504
    %v509 = vxor.u32 %v507, 2147483648
    %v510 = vxor.u32 %v508, 2147483648
    %v511 = vmul.f32 %v509, 1.442695
    %v512 = vpow.pop %v511
    %v513 = vmul.f32 %v510, 1.442695
    %v514 = vpow.pop %v513
    %v515 = vadd.f32 %v512, 1.0
    %v516 = vadd.f32 %v514, 1.0
    %v517 = vrcp.pop %v515
    %v518 = vmul.f32 1.0, %v517
    %v519 = vrcp.pop %v516
    %v520 = vmul.f32 1.0, %v519
    %v521 = vtanh.pop %v507
    %v522 = vtanh.pop %v508
    %v525 = vrot.slane %v410, 7
    %v526 = vrot.slane %v411, 7
    %v529 = vmul.f32 %v518, %v525
    %v530 = vmul.f32 %v520, %v526
    %533 = vrot.lane.b32.xlu0 %v521, 64
    %v534 = vpop.permute.xlu0 %533
    %535 = vrot.lane.b32.xlu0 %v522, 64
    %v536 = vpop.permute.xlu0 %535
    %v539 = vmul.f32 %v518, %v534
    %v540 = vmul.f32 %v520, %v536
    %543 = vrot.lane.b32.xlu0 %v539, 32
    %v544 = vpop.permute.xlu0 %543
    %545 = vrot.lane.b32.xlu0 %v540, 32
    %v546 = vpop.permute.xlu0 %545
    %v549 = vadd.f32 %v529, %v544
    %v550 = vadd.f32 %v530, %v546
    %v551 = vtanh.pop %v549
    %v552 = vtanh.pop %v550
    %555 = vrot.lane.b32.xlu0 %v551, 64
    %v556 = vpop.permute.xlu0 %555
    %557 = vrot.lane.b32.xlu0 %v552, 64
    %v558 = vpop.permute.xlu0 %557
    %v561 = vmul.f32 %v518, %v556
    %v562 = vmul.f32 %v520, %v558
    %v565 = vrot.slane %v561, 2
    %v566 = vrot.slane %v562, 1
    %v567 = vsel %vm288, %v566, %v565
    %568 = vrot.lane.b32.xlu0 %v567, 32
    %v569 = vpop.permute.xlu0 %568
    %v570 = vsel %vm72, %v569, 0
    %572 = vmatprep.subr.mxu0 0.0
    %573 = vmatpush1.msra.mxu0 %v154
    %574 = vmatprep.subr.mxu0 0.0
    %575 = vmatpush1.msra.mxu0 %v155
    %576 = vmatprep.subr.mxu0 0.0
    %577 = vmatpush1.msra.mxu0 %v156
    %578 = vmatprep.subr.mxu0 0.0
    %579 = vmatpush1.msra.mxu0 %v157
    %580 = vmatprep.subr.mxu0 0.0
    %581 = vmatpush1.msra.mxu0 0.0
    %582 = vmatprep.subr.mxu0 0.0
    %583 = vmatpush1.msra.mxu0 0.0
    %584 = vmatprep.subr.mxu0 0.0
    %585 = vmatpush1.msra.mxu0 0.0
    %586 = vmatprep.subr.mxu0 0.0
    %587 = vmatpush1.msra.mxu0 0.0
    %588 = vmatprep.subr.mxu0 0.0
    %589 = vmatpush1.msra.mxu0 0.0
    %590 = vmatprep.subr.mxu0 0.0
    %591 = vmatpush1.msra.mxu0 0.0
    %592 = vmatprep.subr.mxu0 0.0
    %593 = vmatpush1.msra.mxu0 0.0
    %594 = vmatprep.subr.mxu0 0.0
    %595 = vmatpush1.msra.mxu0 0.0
    %596 = vmatprep.subr.mxu0 0.0
    %597 = vmatpush1.msra.mxu0 0.0
    %598 = vmatprep.subr.mxu0 0.0
    %599 = vmatpush1.msra.mxu0 0.0
    %600 = vmatprep.subr.mxu0 0.0
    %601 = vmatpush1.msra.mxu0 0.0
    %602 = vmatprep.subr.mxu0 0.0
    %603 = vmatpush1.msra.mxu0 0.0
    %604 = vmatprep.subr.mxu0 0.0
    %605 = vmatpush1.msra.mxu0 0.0
    %606 = vmatprep.subr.mxu0 0.0
    %607 = vmatpush1.msra.mxu0 0.0
    %608 = vmatprep.subr.mxu0 0.0
    %609 = vmatpush1.msra.mxu0 0.0
    %610 = vmatprep.subr.mxu0 0.0
    %611 = vmatpush1.msra.mxu0 0.0
    %612 = vmatprep.subr.mxu0 0.0
    %613 = vmatpush1.msra.mxu0 0.0
    %614 = vmatprep.subr.mxu0 0.0
    %615 = vmatpush1.msra.mxu0 0.0
    %616 = vmatprep.subr.mxu0 0.0
    %617 = vmatpush1.msra.mxu0 0.0
    %618 = vmatprep.subr.mxu0 0.0
    %619 = vmatpush1.msra.mxu0 0.0
    %620 = vmatprep.subr.mxu0 0.0
    %621 = vmatpush1.msra.mxu0 0.0
    %622 = vmatprep.subr.mxu0 0.0
    %623 = vmatpush1.msra.mxu0 0.0
    %624 = vmatprep.subr.mxu0 0.0
    %625 = vmatpush1.msra.mxu0 0.0
    %626 = vmatprep.subr.mxu0 0.0
    %627 = vmatpush1.msra.mxu0 0.0
    %628 = vmatprep.subr.mxu0 0.0
    %629 = vmatpush1.msra.mxu0 0.0
    %630 = vmatprep.subr.mxu0 0.0
    %631 = vmatpush1.msra.mxu0 0.0
    %632 = vmatprep.subr.mxu0 0.0
    %633 = vmatpush1.msra.mxu0 0.0
    %634 = vmatprep.subr.mxu0 0.0
    %635 = vmatpush1.msra.mxu0 0.0
    %636 = vmatprep.mubr.f32.mxu0 0.0
    %637 = vmatmul.mubr.f32.gmra.mrb[0].mxu0 %v570
    %v638 = vpop.f32.mrb[0].mxu0
    %v639 = vadd.f32 0.0, %v638
    %v640 = vpop.f32.mrb[0].mxu0
    %641 = vdwg.mxu0
    %v643 = vrot.slane %v639, 5
    %v644 = vrot.slane %v639, 6
    %v647 = vadd.f32 %v146, %v643
    %v648 = vadd.f32 %v151, %v644
    %v649 = vxor.u32 %v647, 2147483648
    %v650 = vxor.u32 %v648, 2147483648
    %v651 = vmul.f32 %v649, 1.442695
    %v652 = vpow.pop %v651
    %v653 = vmul.f32 %v650, 1.442695
    %v654 = vpow.pop %v653
    %v655 = vadd.f32 %v652, 1.0
    %v656 = vadd.f32 %v654, 1.0
    %v657 = vrcp.pop %v655
    %v658 = vmul.f32 1.0, %v657
    %v659 = vrcp.pop %v656
    %v660 = vmul.f32 1.0, %v659
    %v661 = vtanh.pop %v647
    %v662 = vtanh.pop %v648
    %v665 = vrot.slane %v549, 7
    %v666 = vrot.slane %v550, 7
    %v669 = vmul.f32 %v658, %v665
    %v670 = vmul.f32 %v660, %v666
    %673 = vrot.lane.b32.xlu0 %v661, 64
    %v674 = vpop.permute.xlu0 %673
    %675 = vrot.lane.b32.xlu0 %v662, 64
    %v676 = vpop.permute.xlu0 %675
    %v679 = vmul.f32 %v658, %v674
    %v680 = vmul.f32 %v660, %v676
    %683 = vrot.lane.b32.xlu0 %v679, 32
    %v684 = vpop.permute.xlu0 %683
    %685 = vrot.lane.b32.xlu0 %v680, 32
    %v686 = vpop.permute.xlu0 %685
    %v689 = vadd.f32 %v669, %v684
    %v690 = vadd.f32 %v670, %v686
    %v691 = vtanh.pop %v689
    %v692 = vtanh.pop %v690
    %695 = vrot.lane.b32.xlu0 %v691, 64
    %v696 = vpop.permute.xlu0 %695
    %697 = vrot.lane.b32.xlu0 %v692, 64
    %v698 = vpop.permute.xlu0 %697
    %v701 = vmul.f32 %v658, %v696
    %v702 = vmul.f32 %v660, %v698
    %v705 = vrot.slane %v701, 3
    %v706 = vrot.slane %v702, 2
    %v707 = vsel %vm288, %v706, %v705
    %708 = vrot.lane.b32.xlu0 %v707, 32
    %v709 = vpop.permute.xlu0 %708
    %v710 = vsel %vm72, %v709, 0
    %712 = vmatprep.subr.mxu0 0.0
    %713 = vmatpush1.msra.mxu0 %v154
    %714 = vmatprep.subr.mxu0 0.0
    %715 = vmatpush1.msra.mxu0 %v155
    %716 = vmatprep.subr.mxu0 0.0
    %717 = vmatpush1.msra.mxu0 %v156
    %718 = vmatprep.subr.mxu0 0.0
    %719 = vmatpush1.msra.mxu0 %v157
    %720 = vmatprep.subr.mxu0 0.0
    %721 = vmatpush1.msra.mxu0 0.0
    %722 = vmatprep.subr.mxu0 0.0
    %723 = vmatpush1.msra.mxu0 0.0
    %724 = vmatprep.subr.mxu0 0.0
    %725 = vmatpush1.msra.mxu0 0.0
    %726 = vmatprep.subr.mxu0 0.0
    %727 = vmatpush1.msra.mxu0 0.0
    %728 = vmatprep.subr.mxu0 0.0
    %729 = vmatpush1.msra.mxu0 0.0
    %730 = vmatprep.subr.mxu0 0.0
    %731 = vmatpush1.msra.mxu0 0.0
    %732 = vmatprep.subr.mxu0 0.0
    %733 = vmatpush1.msra.mxu0 0.0
    %734 = vmatprep.subr.mxu0 0.0
    %735 = vmatpush1.msra.mxu0 0.0
    %736 = vmatprep.subr.mxu0 0.0
    %737 = vmatpush1.msra.mxu0 0.0
    %738 = vmatprep.subr.mxu0 0.0
    %739 = vmatpush1.msra.mxu0 0.0
    %740 = vmatprep.subr.mxu0 0.0
    %741 = vmatpush1.msra.mxu0 0.0
    %742 = vmatprep.subr.mxu0 0.0
    %743 = vmatpush1.msra.mxu0 0.0
    %744 = vmatprep.subr.mxu0 0.0
    %745 = vmatpush1.msra.mxu0 0.0
    %746 = vmatprep.subr.mxu0 0.0
    %747 = vmatpush1.msra.mxu0 0.0
    %748 = vmatprep.subr.mxu0 0.0
    %749 = vmatpush1.msra.mxu0 0.0
    %750 = vmatprep.subr.mxu0 0.0
    %751 = vmatpush1.msra.mxu0 0.0
    %752 = vmatprep.subr.mxu0 0.0
    %753 = vmatpush1.msra.mxu0 0.0
    %754 = vmatprep.subr.mxu0 0.0
    %755 = vmatpush1.msra.mxu0 0.0
    %756 = vmatprep.subr.mxu0 0.0
    %757 = vmatpush1.msra.mxu0 0.0
    %758 = vmatprep.subr.mxu0 0.0
    %759 = vmatpush1.msra.mxu0 0.0
    %760 = vmatprep.subr.mxu0 0.0
    %761 = vmatpush1.msra.mxu0 0.0
    %762 = vmatprep.subr.mxu0 0.0
    %763 = vmatpush1.msra.mxu0 0.0
    %764 = vmatprep.subr.mxu0 0.0
    %765 = vmatpush1.msra.mxu0 0.0
    %766 = vmatprep.subr.mxu0 0.0
    %767 = vmatpush1.msra.mxu0 0.0
    %768 = vmatprep.subr.mxu0 0.0
    %769 = vmatpush1.msra.mxu0 0.0
    %770 = vmatprep.subr.mxu0 0.0
    %771 = vmatpush1.msra.mxu0 0.0
    %772 = vmatprep.subr.mxu0 0.0
    %773 = vmatpush1.msra.mxu0 0.0
    %774 = vmatprep.subr.mxu0 0.0
    %775 = vmatpush1.msra.mxu0 0.0
    %776 = vmatprep.mubr.f32.mxu0 0.0
    %777 = vmatmul.mubr.f32.gmra.mrb[0].mxu0 %v710
    %v778 = vpop.f32.mrb[0].mxu0
    %v779 = vadd.f32 0.0, %v778
    %v780 = vpop.f32.mrb[0].mxu0
    %781 = vdwg.mxu0
    %v783 = vrot.slane %v779, 4
    %v784 = vrot.slane %v779, 5
    %v787 = vadd.f32 %v146, %v783
    %v788 = vadd.f32 %v151, %v784
    %v789 = vxor.u32 %v787, 2147483648
    %v790 = vxor.u32 %v788, 2147483648
    %v791 = vmul.f32 %v789, 1.442695
    %v792 = vpow.pop %v791
    %v793 = vmul.f32 %v790, 1.442695
    %v794 = vpow.pop %v793
    %v795 = vadd.f32 %v792, 1.0
    %v796 = vadd.f32 %v794, 1.0
    %v797 = vrcp.pop %v795
    %v798 = vmul.f32 1.0, %v797
    %v799 = vrcp.pop %v796
    %v800 = vmul.f32 1.0, %v799
    %v801 = vtanh.pop %v787
    %v802 = vtanh.pop %v788
    %v805 = vrot.slane %v689, 7
    %v806 = vrot.slane %v690, 7
    %v809 = vmul.f32 %v798, %v805
    %v810 = vmul.f32 %v800, %v806
    %813 = vrot.lane.b32.xlu0 %v801, 64
    %v814 = vpop.permute.xlu0 %813
    %815 = vrot.lane.b32.xlu0 %v802, 64
    %v816 = vpop.permute.xlu0 %815
    %v819 = vmul.f32 %v798, %v814
    %v820 = vmul.f32 %v800, %v816
    %823 = vrot.lane.b32.xlu0 %v819, 32
    %v824 = vpop.permute.xlu0 %823
    %825 = vrot.lane.b32.xlu0 %v820, 32
    %v826 = vpop.permute.xlu0 %825
    %v829 = vadd.f32 %v809, %v824
    %v830 = vadd.f32 %v810, %v826
    %v831 = vtanh.pop %v829
    %v832 = vtanh.pop %v830
    %835 = vrot.lane.b32.xlu0 %v831, 64
    %v836 = vpop.permute.xlu0 %835
    %837 = vrot.lane.b32.xlu0 %v832, 64
    %v838 = vpop.permute.xlu0 %837
    %v841 = vmul.f32 %v798, %v836
    %v842 = vmul.f32 %v800, %v838
    %v845 = vrot.slane %v841, 4
    %v846 = vrot.slane %v842, 3
    %v847 = vsel %vm288, %v846, %v845
    %848 = vrot.lane.b32.xlu0 %v847, 32
    %v849 = vpop.permute.xlu0 %848
    %v850 = vsel %vm72, %v849, 0
    %852 = vmatprep.subr.mxu0 0.0
    %853 = vmatpush1.msra.mxu0 %v154
    %854 = vmatprep.subr.mxu0 0.0
    %855 = vmatpush1.msra.mxu0 %v155
    %856 = vmatprep.subr.mxu0 0.0
    %857 = vmatpush1.msra.mxu0 %v156
    %858 = vmatprep.subr.mxu0 0.0
    %859 = vmatpush1.msra.mxu0 %v157
    %860 = vmatprep.subr.mxu0 0.0
    %861 = vmatpush1.msra.mxu0 0.0
    %862 = vmatprep.subr.mxu0 0.0
    %863 = vmatpush1.msra.mxu0 0.0
    %864 = vmatprep.subr.mxu0 0.0
    %865 = vmatpush1.msra.mxu0 0.0
    %866 = vmatprep.subr.mxu0 0.0
    %867 = vmatpush1.msra.mxu0 0.0
    %868 = vmatprep.subr.mxu0 0.0
    %869 = vmatpush1.msra.mxu0 0.0
    %870 = vmatprep.subr.mxu0 0.0
    %871 = vmatpush1.msra.mxu0 0.0
    %872 = vmatprep.subr.mxu0 0.0
    %873 = vmatpush1.msra.mxu0 0.0
    %874 = vmatprep.subr.mxu0 0.0
    %875 = vmatpush1.msra.mxu0 0.0
    %876 = vmatprep.subr.mxu0 0.0
    %877 = vmatpush1.msra.mxu0 0.0
    %878 = vmatprep.subr.mxu0 0.0
    %879 = vmatpush1.msra.mxu0 0.0
    %880 = vmatprep.subr.mxu0 0.0
    %881 = vmatpush1.msra.mxu0 0.0
    %882 = vmatprep.subr.mxu0 0.0
    %883 = vmatpush1.msra.mxu0 0.0
    %884 = vmatprep.subr.mxu0 0.0
    %885 = vmatpush1.msra.mxu0 0.0
    %886 = vmatprep.subr.mxu0 0.0
    %887 = vmatpush1.msra.mxu0 0.0
    %888 = vmatprep.subr.mxu0 0.0
    %889 = vmatpush1.msra.mxu0 0.0
    %890 = vmatprep.subr.mxu0 0.0
    %891 = vmatpush1.msra.mxu0 0.0
    %892 = vmatprep.subr.mxu0 0.0
    %893 = vmatpush1.msra.mxu0 0.0
    %894 = vmatprep.subr.mxu0 0.0
    %895 = vmatpush1.msra.mxu0 0.0
    %896 = vmatprep.subr.mxu0 0.0
    %897 = vmatpush1.msra.mxu0 0.0
    %898 = vmatprep.subr.mxu0 0.0
    %899 = vmatpush1.msra.mxu0 0.0
    %900 = vmatprep.subr.mxu0 0.0
    %901 = vmatpush1.msra.mxu0 0.0
    %902 = vmatprep.subr.mxu0 0.0
    %903 = vmatpush1.msra.mxu0 0.0
    %904 = vmatprep.subr.mxu0 0.0
    %905 = vmatpush1.msra.mxu0 0.0
    %906 = vmatprep.subr.mxu0 0.0
    %907 = vmatpush1.msra.mxu0 0.0
    %908 = vmatprep.subr.mxu0 0.0
    %909 = vmatpush1.msra.mxu0 0.0
    %910 = vmatprep.subr.mxu0 0.0
    %911 = vmatpush1.msra.mxu0 0.0
    %912 = vmatprep.subr.mxu0 0.0
    %913 = vmatpush1.msra.mxu0 0.0
    %914 = vmatprep.subr.mxu0 0.0
    %915 = vmatpush1.msra.mxu0 0.0
    %916 = vmatprep.mubr.f32.mxu0 0.0
    %917 = vmatmul.mubr.f32.gmra.mrb[0].mxu0 %v850
    %v918 = vpop.f32.mrb[0].mxu0
    %v919 = vadd.f32 0.0, %v918
    %v920 = vpop.f32.mrb[0].mxu0
    %921 = vdwg.mxu0
    %v923 = vrot.slane %v919, 3
    %v924 = vrot.slane %v919, 4
    %v927 = vadd.f32 %v146, %v923
    %v928 = vadd.f32 %v151, %v924
    %v929 = vxor.u32 %v927, 2147483648
    %v930 = vxor.u32 %v928, 2147483648
    %v931 = vmul.f32 %v929, 1.442695
    %v932 = vpow.pop %v931
    %v933 = vmul.f32 %v930, 1.442695
    %v934 = vpow.pop %v933
    %v935 = vadd.f32 %v932, 1.0
    %v936 = vadd.f32 %v934, 1.0
    %v937 = vrcp.pop %v935
    %v938 = vmul.f32 1.0, %v937
    %v939 = vrcp.pop %v936
    %v940 = vmul.f32 1.0, %v939
    %v941 = vtanh.pop %v927
    %v942 = vtanh.pop %v928
    %v945 = vrot.slane %v829, 7
    %v946 = vrot.slane %v830, 7
    %v949 = vmul.f32 %v938, %v945
    %v950 = vmul.f32 %v940, %v946
    %953 = vrot.lane.b32.xlu0 %v941, 64
    %v954 = vpop.permute.xlu0 %953
    %955 = vrot.lane.b32.xlu0 %v942, 64
    %v956 = vpop.permute.xlu0 %955
    %v959 = vmul.f32 %v938, %v954
    %v960 = vmul.f32 %v940, %v956
    %963 = vrot.lane.b32.xlu0 %v959, 32
    %v964 = vpop.permute.xlu0 %963
    %965 = vrot.lane.b32.xlu0 %v960, 32
    %v966 = vpop.permute.xlu0 %965
    %v969 = vadd.f32 %v949, %v964
    %v970 = vadd.f32 %v950, %v966
    %v971 = vtanh.pop %v969
    %v972 = vtanh.pop %v970
    %975 = vrot.lane.b32.xlu0 %v971, 64
    %v976 = vpop.permute.xlu0 %975
    %977 = vrot.lane.b32.xlu0 %v972, 64
    %v978 = vpop.permute.xlu0 %977
    %v981 = vmul.f32 %v938, %v976
    %v982 = vmul.f32 %v940, %v978
    %v985 = vrot.slane %v981, 5
    %v986 = vrot.slane %v982, 4
    %v987 = vsel %vm288, %v986, %v985
    %988 = vrot.lane.b32.xlu0 %v987, 32
    %v989 = vpop.permute.xlu0 %988
    %v990 = vsel %vm72, %v989, 0
    %992 = vmatprep.subr.mxu0 0.0
    %993 = vmatpush1.msra.mxu0 %v154
    %994 = vmatprep.subr.mxu0 0.0
    %995 = vmatpush1.msra.mxu0 %v155
    %996 = vmatprep.subr.mxu0 0.0
    %997 = vmatpush1.msra.mxu0 %v156
    %998 = vmatprep.subr.mxu0 0.0
    %999 = vmatpush1.msra.mxu0 %v157
    %1000 = vmatprep.subr.mxu0 0.0
    %1001 = vmatpush1.msra.mxu0 0.0
    %1002 = vmatprep.subr.mxu0 0.0
    %1003 = vmatpush1.msra.mxu0 0.0
    %1004 = vmatprep.subr.mxu0 0.0
    %1005 = vmatpush1.msra.mxu0 0.0
    %1006 = vmatprep.subr.mxu0 0.0
    %1007 = vmatpush1.msra.mxu0 0.0
    %1008 = vmatprep.subr.mxu0 0.0
    %1009 = vmatpush1.msra.mxu0 0.0
    %1010 = vmatprep.subr.mxu0 0.0
    %1011 = vmatpush1.msra.mxu0 0.0
    %1012 = vmatprep.subr.mxu0 0.0
    %1013 = vmatpush1.msra.mxu0 0.0
    %1014 = vmatprep.subr.mxu0 0.0
    %1015 = vmatpush1.msra.mxu0 0.0
    %1016 = vmatprep.subr.mxu0 0.0
    %1017 = vmatpush1.msra.mxu0 0.0
    %1018 = vmatprep.subr.mxu0 0.0
    %1019 = vmatpush1.msra.mxu0 0.0
    %1020 = vmatprep.subr.mxu0 0.0
    %1021 = vmatpush1.msra.mxu0 0.0
    %1022 = vmatprep.subr.mxu0 0.0
    %1023 = vmatpush1.msra.mxu0 0.0
    %1024 = vmatprep.subr.mxu0 0.0
    %1025 = vmatpush1.msra.mxu0 0.0
    %1026 = vmatprep.subr.mxu0 0.0
    %1027 = vmatpush1.msra.mxu0 0.0
    %1028 = vmatprep.subr.mxu0 0.0
    %1029 = vmatpush1.msra.mxu0 0.0
    %1030 = vmatprep.subr.mxu0 0.0
    %1031 = vmatpush1.msra.mxu0 0.0
    %1032 = vmatprep.subr.mxu0 0.0
    %1033 = vmatpush1.msra.mxu0 0.0
    %1034 = vmatprep.subr.mxu0 0.0
    %1035 = vmatpush1.msra.mxu0 0.0
    %1036 = vmatprep.subr.mxu0 0.0
    %1037 = vmatpush1.msra.mxu0 0.0
    %1038 = vmatprep.subr.mxu0 0.0
    %1039 = vmatpush1.msra.mxu0 0.0
    %1040 = vmatprep.subr.mxu0 0.0
    %1041 = vmatpush1.msra.mxu0 0.0
    %1042 = vmatprep.subr.mxu0 0.0
    %1043 = vmatpush1.msra.mxu0 0.0
    %1044 = vmatprep.subr.mxu0 0.0
    %1045 = vmatpush1.msra.mxu0 0.0
    %1046 = vmatprep.subr.mxu0 0.0
    %1047 = vmatpush1.msra.mxu0 0.0
    %1048 = vmatprep.subr.mxu0 0.0
    %1049 = vmatpush1.msra.mxu0 0.0
    %1050 = vmatprep.subr.mxu0 0.0
    %1051 = vmatpush1.msra.mxu0 0.0
    %1052 = vmatprep.subr.mxu0 0.0
    %1053 = vmatpush1.msra.mxu0 0.0
    %1054 = vmatprep.subr.mxu0 0.0
    %1055 = vmatpush1.msra.mxu0 0.0
    %1056 = vmatprep.mubr.f32.mxu0 0.0
    %1057 = vmatmul.mubr.f32.gmra.mrb[0].mxu0 %v990
    %v1058 = vpop.f32.mrb[0].mxu0
    %v1059 = vadd.f32 0.0, %v1058
    %v1060 = vpop.f32.mrb[0].mxu0
    %1061 = vdwg.mxu0
    %v1063 = vrot.slane %v1059, 2
    %v1064 = vrot.slane %v1059, 3
    %v1067 = vadd.f32 %v146, %v1063
    %v1068 = vadd.f32 %v151, %v1064
    %v1069 = vxor.u32 %v1067, 2147483648
    %v1070 = vxor.u32 %v1068, 2147483648
    %v1071 = vmul.f32 %v1069, 1.442695
    %v1072 = vpow.pop %v1071
    %v1073 = vmul.f32 %v1070, 1.442695
    %v1074 = vpow.pop %v1073
    %v1075 = vadd.f32 %v1072, 1.0
    %v1076 = vadd.f32 %v1074, 1.0
    %v1077 = vrcp.pop %v1075
    %v1078 = vmul.f32 1.0, %v1077
    %v1079 = vrcp.pop %v1076
    %v1080 = vmul.f32 1.0, %v1079
    %v1081 = vtanh.pop %v1067
    %v1082 = vtanh.pop %v1068
    %v1085 = vrot.slane %v969, 7
    %v1086 = vrot.slane %v970, 7
    %v1089 = vmul.f32 %v1078, %v1085
    %v1090 = vmul.f32 %v1080, %v1086
    %1093 = vrot.lane.b32.xlu0 %v1081, 64
    %v1094 = vpop.permute.xlu0 %1093
    %1095 = vrot.lane.b32.xlu0 %v1082, 64
    %v1096 = vpop.permute.xlu0 %1095
    %v1099 = vmul.f32 %v1078, %v1094
    %v1100 = vmul.f32 %v1080, %v1096
    %1103 = vrot.lane.b32.xlu0 %v1099, 32
    %v1104 = vpop.permute.xlu0 %1103
    %1105 = vrot.lane.b32.xlu0 %v1100, 32
    %v1106 = vpop.permute.xlu0 %1105
    %v1109 = vadd.f32 %v1089, %v1104
    %v1110 = vadd.f32 %v1090, %v1106
    %v1111 = vtanh.pop %v1109
    %v1112 = vtanh.pop %v1110
    %1115 = vrot.lane.b32.xlu0 %v1111, 64
    %v1116 = vpop.permute.xlu0 %1115
    %1117 = vrot.lane.b32.xlu0 %v1112, 64
    %v1118 = vpop.permute.xlu0 %1117
    %v1121 = vmul.f32 %v1078, %v1116
    %v1122 = vmul.f32 %v1080, %v1118
    %v1125 = vrot.slane %v1121, 6
    %v1126 = vrot.slane %v1122, 5
    %v1127 = vsel %vm288, %v1126, %v1125
    %1128 = vrot.lane.b32.xlu0 %v1127, 32
    %v1129 = vpop.permute.xlu0 %1128
    %v1130 = vsel %vm72, %v1129, 0
    %1132 = vmatprep.subr.mxu0 0.0
    %1133 = vmatpush1.msra.mxu0 %v154
    %1134 = vmatprep.subr.mxu0 0.0
    %1135 = vmatpush1.msra.mxu0 %v155
    %1136 = vmatprep.subr.mxu0 0.0
    %1137 = vmatpush1.msra.mxu0 %v156
    %1138 = vmatprep.subr.mxu0 0.0
    %1139 = vmatpush1.msra.mxu0 %v157
    %1140 = vmatprep.subr.mxu0 0.0
    %1141 = vmatpush1.msra.mxu0 0.0
    %1142 = vmatprep.subr.mxu0 0.0
    %1143 = vmatpush1.msra.mxu0 0.0
    %1144 = vmatprep.subr.mxu0 0.0
    %1145 = vmatpush1.msra.mxu0 0.0
    %1146 = vmatprep.subr.mxu0 0.0
    %1147 = vmatpush1.msra.mxu0 0.0
    %1148 = vmatprep.subr.mxu0 0.0
    %1149 = vmatpush1.msra.mxu0 0.0
    %1150 = vmatprep.subr.mxu0 0.0
    %1151 = vmatpush1.msra.mxu0 0.0
    %1152 = vmatprep.subr.mxu0 0.0
    %1153 = vmatpush1.msra.mxu0 0.0
    %1154 = vmatprep.subr.mxu0 0.0
    %1155 = vmatpush1.msra.mxu0 0.0
    %1156 = vmatprep.subr.mxu0 0.0
    %1157 = vmatpush1.msra.mxu0 0.0
    %1158 = vmatprep.subr.mxu0 0.0
    %1159 = vmatpush1.msra.mxu0 0.0
    %1160 = vmatprep.subr.mxu0 0.0
    %1161 = vmatpush1.msra.mxu0 0.0
    %1162 = vmatprep.subr.mxu0 0.0
    %1163 = vmatpush1.msra.mxu0 0.0
    %1164 = vmatprep.subr.mxu0 0.0
    %1165 = vmatpush1.msra.mxu0 0.0
    %1166 = vmatprep.subr.mxu0 0.0
    %1167 = vmatpush1.msra.mxu0 0.0
    %1168 = vmatprep.subr.mxu0 0.0
    %1169 = vmatpush1.msra.mxu0 0.0
    %1170 = vmatprep.subr.mxu0 0.0
    %1171 = vmatpush1.msra.mxu0 0.0
    %1172 = vmatprep.subr.mxu0 0.0
    %1173 = vmatpush1.msra.mxu0 0.0
    %1174 = vmatprep.subr.mxu0 0.0
    %1175 = vmatpush1.msra.mxu0 0.0
    %1176 = vmatprep.subr.mxu0 0.0
    %1177 = vmatpush1.msra.mxu0 0.0
    %1178 = vmatprep.subr.mxu0 0.0
    %1179 = vmatpush1.msra.mxu0 0.0
    %1180 = vmatprep.subr.mxu0 0.0
    %1181 = vmatpush1.msra.mxu0 0.0
    %1182 = vmatprep.subr.mxu0 0.0
    %1183 = vmatpush1.msra.mxu0 0.0
    %1184 = vmatprep.subr.mxu0 0.0
    %1185 = vmatpush1.msra.mxu0 0.0
    %1186 = vmatprep.subr.mxu0 0.0
    %1187 = vmatpush1.msra.mxu0 0.0
    %1188 = vmatprep.subr.mxu0 0.0
    %1189 = vmatpush1.msra.mxu0 0.0
    %1190 = vmatprep.subr.mxu0 0.0
    %1191 = vmatpush1.msra.mxu0 0.0
    %1192 = vmatprep.subr.mxu0 0.0
    %1193 = vmatpush1.msra.mxu0 0.0
    %1194 = vmatprep.subr.mxu0 0.0
    %1195 = vmatpush1.msra.mxu0 0.0
    %1196 = vmatprep.mubr.f32.mxu0 0.0
    %1197 = vmatmul.mubr.f32.gmra.mrb[0].mxu0 %v1130
    %v1198 = vpop.f32.mrb[0].mxu0
    %v1199 = vadd.f32 0.0, %v1198
    %v1200 = vpop.f32.mrb[0].mxu0
    %1201 = vdwg.mxu0
    %v1203 = vrot.slane %v1199, 1
    %v1204 = vrot.slane %v1199, 2
    %v1207 = vadd.f32 %v146, %v1203
    %v1208 = vadd.f32 %v151, %v1204
    %v1209 = vxor.u32 %v1207, 2147483648
    %v1210 = vxor.u32 %v1208, 2147483648
    %v1211 = vmul.f32 %v1209, 1.442695
    %v1212 = vpow.pop %v1211
    %v1213 = vmul.f32 %v1210, 1.442695
    %v1214 = vpow.pop %v1213
    %v1215 = vadd.f32 %v1212, 1.0
    %v1216 = vadd.f32 %v1214, 1.0
    %v1217 = vrcp.pop %v1215
    %v1218 = vmul.f32 1.0, %v1217
    %v1219 = vrcp.pop %v1216
    %v1220 = vmul.f32 1.0, %v1219
    %v1221 = vtanh.pop %v1207
    %v1222 = vtanh.pop %v1208
    %v1225 = vrot.slane %v1109, 7
    %v1226 = vrot.slane %v1110, 7
    %v1229 = vmul.f32 %v1218, %v1225
    %v1230 = vmul.f32 %v1220, %v1226
    %1233 = vrot.lane.b32.xlu0 %v1221, 64
    %v1234 = vpop.permute.xlu0 %1233
    %1235 = vrot.lane.b32.xlu0 %v1222, 64
    %v1236 = vpop.permute.xlu0 %1235
    %v1239 = vmul.f32 %v1218, %v1234
    %v1240 = vmul.f32 %v1220, %v1236
    %1243 = vrot.lane.b32.xlu0 %v1239, 32
    %v1244 = vpop.permute.xlu0 %1243
    %1245 = vrot.lane.b32.xlu0 %v1240, 32
    %v1246 = vpop.permute.xlu0 %1245
    %v1249 = vadd.f32 %v1229, %v1244
    %v1250 = vadd.f32 %v1230, %v1246
    %v1251 = vtanh.pop %v1249
    %v1252 = vtanh.pop %v1250
    %1255 = vrot.lane.b32.xlu0 %v1251, 64
    %v1256 = vpop.permute.xlu0 %1255
    %1257 = vrot.lane.b32.xlu0 %v1252, 64
    %v1258 = vpop.permute.xlu0 %1257
    %v1261 = vmul.f32 %v1218, %v1256
    %v1262 = vmul.f32 %v1220, %v1258
    %v1265 = vrot.slane %v1262, 7
    %1266 = vrot.lane.b32.xlu0 %v1261, 32
    %v1267 = vpop.permute.xlu0 %1266
    %1268 = vrot.lane.b32.xlu0 %v1265, 32
    %v1269 = vpop.permute.xlu0 %1268
    %vm1272 = vcmask 261127
    %1273 = vst.msk [vmem:[#allocation8 - $0x7] sm:$0x80] %vm1272, %v1267
    %vm1274 = vcmask 253952
    %1275 = vst.msk [vmem:[#allocation8 + $0x1] sm:$0x1] %vm1274, %v1269
    // Predicated region
    $region30: #{tpu_custom_call.1} parent=1 // pred_check
      _
    $region31: #{tpu_custom_call.1} parent=1 // pred_check_branch
      %1277 = sbr.rel (0) target = $region33
    $region32: #{tpu_custom_call.1} parent=1 // pred_region
      %s1279 = ssub.s32 32, 32
      %1280 = vsyncadd [#allocation4], %s1279
      %s1282 = sshll.u32 [#allocation8], 4
      %s1283 = int_to_ptr.vmem [resolvable:$true] %s1282
      %1285 = dma.vmem_to_hbm [thread:$0]  %s1283, 32, %s4, [#allocation4]
    $region33: #{tpu_custom_call.1} parent=1 // pred_fallthru
      _
    // Predicated region
    $region34: #{tpu_custom_call.1} parent=1 // pred_check
      _
    $region35: #{tpu_custom_call.1} parent=1 // pred_check_branch
      %1287 = sbr.rel (0) target = $region37
    $region36: #{tpu_custom_call.1} parent=1 // pred_region
      %1288 = dma.done [#allocation4], 32
    $region37: #{tpu_custom_call.1} parent=1 // pred_fallthru
      _
    %1289 = vsyncpa [#allocation3], 1
    %1290 = vsyncpa [#allocation6], 1
    %1291 = vsyncpa [#allocation4], 1

</llo_original>
